<compile_context>
chip_gen: v7x
topology: tpu7x:2x2x1
jax: 0.10.0
libtpu: 0.0.40
codegen_flags: <defaults>
</compile_context>

<pallas_src>
import math
from functools import partial

import jax
import jax.numpy as jnp
from jax.experimental import pallas as pl
from jax.experimental.pallas import tpu as pltpu


# ----------------------------------------------------------------------------
# Kernels
# ----------------------------------------------------------------------------
def _add_kernel(y_ref, x_ref, o_ref):
    # Elementwise residual add on a lane-dense (bm, lanes) tile.
    o_ref[...] = y_ref[...] + x_ref[...]


def _fused_kernel(x_ref, o_ref, *, fn):
    # fn is elementwise -> safe to apply per block; fuses fn(x) + x in one pass.
    x = x_ref[...]
    o_ref[...] = (fn(x) + x).astype(o_ref.dtype)


# ----------------------------------------------------------------------------
# Layout planning: lane-dense 2-D view + block size
# ----------------------------------------------------------------------------
def _plan(shape, target_block_rows=2048):
    """Pick a (rows, lanes) view and a block row count.

    Prefers lanes % 128 == 0 (unmasked stores, dense lanes) and rows % 8 == 0
    (dense sublanes). Falls back to (prod(leading), last_dim) if the element
    count is not a multiple of 128 (block then equals full array dims).
    """
    n = math.prod(shape)

    rows, lanes = None, None
    # Largest lane width whose row count stays a multiple of 8.
    for cand in (1024, 512, 256, 128):
        if n % cand == 0 and (n // cand) % 8 == 0:
            rows, lanes = n // cand, cand
            break
    if lanes is None and n % 128 == 0:
        rows, lanes = n // 128, 128          # maximize sublane occupancy
    if lanes is None:
        lanes = shape[-1]
        rows = n // lanes

    # Block rows: one fat block for small inputs, else a divisor of `rows`
    # that is a multiple of 8 (keeps every block (8,128)-aligned).
    if rows <= target_block_rows:
        bm = rows
    else:
        bm = rows
        cand = target_block_rows - (target_block_rows % 8)
        while cand >= 8:
            if rows % cand == 0:
                bm = cand
                break
            cand -= 8
    return rows, lanes, bm


def _pallas_elementwise(kernel, out_dtype, rows, lanes, bm, *arrays):
    grid = (rows // bm,)
    return pl.pallas_call(
        kernel,
        out_shape=jax.ShapeDtypeStruct((rows, lanes), out_dtype),
        grid=grid,
        in_specs=[pl.BlockSpec((bm, lanes), lambda i: (i, 0)) for _ in arrays],
        out_specs=pl.BlockSpec((bm, lanes), lambda i: (i, 0)),
        compiler_params=pltpu.CompilerParams(
            dimension_semantics=("parallel",)  # shards across the 2 TCs on v7x;
        ),                                     # harmless no-op on v5e/v6e.
    )(*arrays)


# ----------------------------------------------------------------------------
# Public API
# ----------------------------------------------------------------------------
def residual_add(y, x):
    """out = y + x via a lane-dense Pallas kernel (y = fn(x) computed outside)."""
    assert y.shape == x.shape, (y.shape, x.shape)
    rows, lanes, bm = _plan(x.shape)
    x2 = x.reshape(rows, lanes)
    y2 = y.astype(x.dtype).reshape(rows, lanes)
    out = _pallas_elementwise(_add_kernel, x.dtype, rows, lanes, bm, y2, x2)
    return out.reshape(x.shape)


def residual_fused_elementwise(fn, x):
    """out = fn(x) + x with an *elementwise* fn traced inside the kernel."""
    rows, lanes, bm = _plan(x.shape)
    x2 = x.reshape(rows, lanes)
    out = _pallas_elementwise(
        partial(_fused_kernel, fn=fn), x.dtype, rows, lanes, bm, x2
    )
    return out.reshape(x.shape)


class Residual:
    """Pallas port of the PyTorch `Residual(fn)` wrapper.

    fn: any JAX callable taking (x, **kwargs). With fuse=True, fn must be
    elementwise / block-local and is evaluated inside the Pallas kernel.
    """

    def __init__(self, fn, fuse=False):
        self.fn = fn
        self.fuse = fuse

    def __call__(self, x, **kwargs):
        if self.fuse:
            return residual_fused_elementwise(lambda v: self.fn(v, **kwargs), x)
        return residual_add(self.fn(x, **kwargs), x)


# ----------------------------------------------------------------------------
# Demo / self-test
# ----------------------------------------------------------------------------
if __name__ == "__main__":
    # Shapes a transformer Residual block sees: (batch, seq, hidden).
    B, S, D = 2, 8, 32
    key = jax.random.PRNGKey(0)
    kx, k1, k2 = jax.random.split(key, 3)
    x = jax.random.normal(kx, (B, S, D), jnp.float32)

    # Representative wrapped fn: a small deterministic feed-forward block.
    w1 = jax.random.normal(k1, (D, 4 * D), jnp.float32) * 0.05
    w2 = jax.random.normal(k2, (4 * D, D), jnp.float32) * 0.05

    def ffn(v):
        return jax.nn.gelu(v @ w1) @ w2

    # 1) Generic path: fn runs as ordinary JAX, residual add is the Pallas kernel.
    res = Residual(ffn)
    out = jax.block_until_ready(res(x))
    ref = ffn(x) + x
    assert out.shape == x.shape, out.shape
    assert jnp.allclose(out, ref, rtol=1e-5, atol=1e-5), float(
        jnp.max(jnp.abs(out - ref))
    )

    # 2) Fused path: elementwise fn evaluated inside the kernel (no extra HBM pass).
    res_fused = Residual(jax.nn.gelu, fuse=True)
    out2 = jax.block_until_ready(res_fused(x))
    ref2 = jax.nn.gelu(x) + x
    assert jnp.allclose(out2, ref2, rtol=1e-5, atol=1e-5), float(
        jnp.max(jnp.abs(out2 - ref2))
    )

    print("KERNEL_OK")
</pallas_src>

<mosaic_0001>
module attributes {stable_mosaic.version = 11 : i64} {
  func.func @_add_kernel(%arg0: i32, %arg1: memref<4x128xf32, #tpu.memory_space<vmem>>, %arg2: memref<4x128xf32, #tpu.memory_space<vmem>>, %arg3: memref<4x128xf32, #tpu.memory_space<vmem>>) attributes {dimension_semantics = [#tpu.dimension_semantics<parallel>], iteration_bounds = array<i64: 1>, scalar_prefetch = 0 : i64, scratch_operands = 0 : i64, tpu.core_type = #tpu.core_type<tc>, window_params = [{transform_indices = @transform_0, window_bounds = array<i64: 4, 128>}, {transform_indices = @transform_1, window_bounds = array<i64: 4, 128>}, {transform_indices = @transform_2, window_bounds = array<i64: 4, 128>}]} {
    %c0 = arith.constant 0 : index
    %c0_0 = arith.constant 0 : index
    %0 = vector.load %arg1[%c0, %c0_0] : memref<4x128xf32, #tpu.memory_space<vmem>>, vector<4x128xf32>
    %c0_1 = arith.constant 0 : index
    %c0_2 = arith.constant 0 : index
    %1 = vector.load %arg2[%c0_1, %c0_2] : memref<4x128xf32, #tpu.memory_space<vmem>>, vector<4x128xf32>
    %2 = arith.addf %0, %1 : vector<4x128xf32>
    %c0_3 = arith.constant 0 : index
    %c0_4 = arith.constant 0 : index
    %3 = vector.load %arg3[%c0_3, %c0_4] : memref<4x128xf32, #tpu.memory_space<vmem>>, vector<4x128xf32>
    tpu.vector_store %arg3[%c0_3, %c0_4], %2 {strides = array<i32>} : memref<4x128xf32, #tpu.memory_space<vmem>>, vector<4x128xf32>,
    return
  }
  func.func @transform_0(%arg0: i32) -> (i32, i32) {
    %c0_i32 = arith.constant 0 : i32
    %c0_i32_0 = arith.constant 0 : i32
    return %arg0, %c0_i32 : i32, i32
  }
  func.func @transform_1(%arg0: i32) -> (i32, i32) {
    %c0_i32 = arith.constant 0 : i32
    %c0_i32_0 = arith.constant 0 : i32
    return %arg0, %c0_i32 : i32, i32
  }
  func.func @transform_2(%arg0: i32) -> (i32, i32) {
    %c0_i32 = arith.constant 0 : i32
    %c0_i32_0 = arith.constant 0 : i32
    return %arg0, %c0_i32 : i32, i32
  }
}

</mosaic_0001>

<llo_original>
// kernel: tpu_custom_call.1
$region0: #{tpu_custom_call.1}
  #allocation0 [shape = 'u32[]', space=smem, size = 0x4, offset = 0x4, fixed_abs, tag = 'smem constant byte address 0x4 - core index']
  #allocation1 [shape = 'u32[144,128]{1,0:T(1,128)}', space=vmem, size = 0x12000, scoped, tag = 'internal scratch']
  %s0 = inlined_call_operand.hbm [shape: f32[4,128], index: 0, kind: input, shape index: {}]
  %s1 = inlined_call_operand.hbm [shape: f32[4,128], index: 1, kind: input, shape index: {}]
  %s2 = inlined_call_operand.hbm [shape: f32[4,128], index: 2, kind: output, shape index: {}]
  %s3 = sld [smem:[#allocation0]]
  $region26: #{tpu_custom_call.1} parent=0
    _
  %s5 = ssub.s32 1, %s3
  %s6 = scalar_select 0, %s5, %s3
  $region1: #{tpu_custom_call.1} parent=0
    #allocation2 [shape = 'u8[2048]{0}', space=vmem, size = 0x800, scoped, tag = 'input window, operand 0, single buffered']
    #allocation3 [shape = 's32[1]{0}', space=sflag, size = 0x4, scoped, tag = 'scoped memory for tpu_custom_call.1']
    #allocation4 [shape = 's32[1]{0}', space=sflag, size = 0x4, scoped, tag = 'scoped memory for tpu_custom_call.1']
    #allocation5 [shape = 'u8[2048]{0}', space=vmem, size = 0x800, scoped, tag = 'input window, operand 1, single buffered']
    #allocation6 [shape = 's32[1]{0}', space=sflag, size = 0x4, scoped, tag = 'scoped memory for tpu_custom_call.1']
    #allocation7 [shape = 'u8[2048]{0}', space=vmem, size = 0x800, scoped, tag = 'output window, operand 0, single buffered']
    %7 = vsyncpa [#allocation3], 0
    %8 = vsyncpa [#allocation6], 0
    %9 = vsyncpa [#allocation4], 0
    // Predicated region
    $region2: #{tpu_custom_call.1} parent=1 // pred_check
      _
    $region3: #{tpu_custom_call.1} parent=1 // pred_check_branch
      %11 = sbr.rel (0) target = $region5
    $region4: #{tpu_custom_call.1} parent=1 // pred_region
      %s13 = ssub.s32 64, 64
      %14 = vsyncadd [#allocation3], %s13
      %s16 = sshll.u32 [#allocation2], 4
      %s17 = int_to_ptr.vmem [resolvable:$true] %s16
      %19 = dma.hbm_to_vmem [thread:$0]  %s0, 64, %s17, [#allocation3]
    $region5: #{tpu_custom_call.1} parent=1 // pred_fallthru
      _
    // Predicated region
    $region6: #{tpu_custom_call.1} parent=1 // pred_check
      _
    $region7: #{tpu_custom_call.1} parent=1 // pred_check_branch
      %21 = sbr.rel (0) target = $region9
    $region8: #{tpu_custom_call.1} parent=1 // pred_region
      %s23 = ssub.s32 64, 64
      %24 = vsyncadd [#allocation6], %s23
      %s26 = sshll.u32 [#allocation5], 4
      %s27 = int_to_ptr.vmem [resolvable:$true] %s26
      %29 = dma.hbm_to_vmem [thread:$0]  %s1, 64, %s27, [#allocation6]
    $region9: #{tpu_custom_call.1} parent=1 // pred_fallthru
      _
    // Predicated region
    $region10: #{tpu_custom_call.1} parent=1 // pred_check
      _
    $region11: #{tpu_custom_call.1} parent=1 // pred_check_branch
      %31 = sbr.rel (0) target = $region13
    $region12: #{tpu_custom_call.1} parent=1 // pred_region
      %32 = dma.done [#allocation3], 64
    $region13: #{tpu_custom_call.1} parent=1 // pred_fallthru
      _
    // Predicated region
    $region14: #{tpu_custom_call.1} parent=1 // pred_check
      _
    $region15: #{tpu_custom_call.1} parent=1 // pred_check_branch
      %34 = sbr.rel (0) target = $region17
    $region16: #{tpu_custom_call.1} parent=1 // pred_region
      %35 = dma.done [#allocation6], 64
    $region17: #{tpu_custom_call.1} parent=1 // pred_fallthru
      _
    %v36 = vld [vmem:[#allocation2] sm:$0xf]
    %v37 = vld [vmem:[#allocation5] sm:$0xf]
    %v38 = vadd.f32 %v36, %v37
    %39 = vst [vmem:[#allocation7] sm:$0xf] %v38
    // Predicated region
    $region18: #{tpu_custom_call.1} parent=1 // pred_check
      _
    $region19: #{tpu_custom_call.1} parent=1 // pred_check_branch
      %41 = sbr.rel (0) target = $region21
    $region20: #{tpu_custom_call.1} parent=1 // pred_region
      %s43 = ssub.s32 64, 64
      %44 = vsyncadd [#allocation4], %s43
      %s46 = sshll.u32 [#allocation7], 4
      %s47 = int_to_ptr.vmem [resolvable:$true] %s46
      %49 = dma.vmem_to_hbm [thread:$0]  %s47, 64, %s2, [#allocation4]
    $region21: #{tpu_custom_call.1} parent=1 // pred_fallthru
      _
    // Predicated region
    $region22: #{tpu_custom_call.1} parent=1 // pred_check
      _
    $region23: #{tpu_custom_call.1} parent=1 // pred_check_branch
      %51 = sbr.rel (0) target = $region25
    $region24: #{tpu_custom_call.1} parent=1 // pred_region
      %52 = dma.done [#allocation4], 64
    $region25: #{tpu_custom_call.1} parent=1 // pred_fallthru
      _
    %53 = vsyncpa [#allocation3], 1
    %54 = vsyncpa [#allocation6], 1
    %55 = vsyncpa [#allocation4], 1

</llo_original>
